<compile_context>
chip_gen: v7x
topology: tpu7x:2x2x1
jax: 0.10.0
libtpu: 0.0.40
codegen_flags: <defaults>
</compile_context>

<pallas_src>
import functools

import jax
import jax.numpy as jnp
from jax.experimental import pallas as pl
from jax.experimental.pallas import tpu as pltpu


def _round_up(a, b):
    return (a + b - 1) // b * b


def _node_shuffle_kernel(x_ref, xj_ref, wsd_ref, wn_ref, wl_ref, btot_ref, out_ref):
    """One tile of TN nodes.

    x_ref:    (TN, C)       node features of this tile
    xj_ref:   (K, TN, C)    gathered neighbor features (neighbor-major)
    wsd_ref:  (C, r*C)      (W_self - W_nbr), PointShuffle-permuted columns
    wn_ref:   (C, r*C)      W_nbr, PointShuffle-permuted columns
    wl_ref:   (C, C_out)    final Linear weight (stored as (in, out))
    btot_ref: (1, r*C_out)  EdgeConv bias pushed through the linear + linear bias
    out_ref:  (TN, r*C_out) per-node wide output (free reshape to (TN*r, C_out) outside)
    """
    tn, c = x_ref.shape
    num_k = xj_ref.shape[0]
    cr = wn_ref.shape[1]
    r = cr // c

    xi = x_ref[...]                                                   # (TN, C)

    # Self path:  xi @ (W_self - W_nbr)   (the -xi@W_nbr term pulled out of the max).
    hs = jnp.dot(xi, wsd_ref[...], preferred_element_type=jnp.float32)  # (TN, rC)

    # Neighbor path: one batched MXU matmul over all k neighbors of the tile.
    xjn = xj_ref[...].reshape(num_k * tn, c)                          # (K*TN, C)
    hn = jnp.dot(xjn, wn_ref[...], preferred_element_type=jnp.float32)  # (K*TN, rC)

    # max over neighbors: contiguous, sublane-aligned static slices (TN % 8 == 0).
    hmax = hn[0:tn]
    for q in range(1, num_k):
        hmax = jnp.maximum(hmax, hn[q * tn:(q + 1) * tn])             # (TN, rC)

    h = hs + hmax                                                     # (TN, rC), bias folded later

    # Final linear applied per r-chunk (hidden is already (r, C)-major) -- no kron.
    wl = wl_ref[...]
    outs = []
    for q in range(r):
        h_chunk = h[:, q * c:(q + 1) * c].astype(wl.dtype)            # (TN, C)
        outs.append(jnp.dot(h_chunk, wl, preferred_element_type=jnp.float32))

    out = jnp.concatenate(outs, axis=-1) + btot_ref[...]              # (TN, r*C_out)
    out_ref[...] = out.astype(out_ref.dtype)


def _knn_indices(x, k):
    """k nearest neighbors (Euclidean, self excluded). Plain-JAX glue."""
    n = x.shape[0]
    sq = jnp.sum(x * x, axis=1)
    d2 = sq[:, None] + sq[None, :] - 2.0 * (x @ x.T)
    d2 = jnp.where(jnp.eye(n, dtype=bool), jnp.inf, d2)
    _, idx = jax.lax.top_k(-d2, k)                                    # (N, k)
    return idx


@functools.partial(jax.jit, static_argnames=("k", "r", "tile_n", "matmul_dtype"))
def node_shuffle(x, wg, bg, wl, bl, *, k, r, tile_n=256, matmul_dtype=None):
    """NodeShuffle forward: [N, C] -> [r*N, C_out]."""
    n, c = x.shape
    cr = c * r
    c_out = wl.shape[1]

    # --- kNN + neighbor gather (neighbor-major layout (k, N, C)) ---------------
    idx = _knn_indices(x, k)                                          # (N, k)
    xj = x[idx.T]                                                     # (k, N, C)

    # --- fold PointShuffle into the GCN weight columns -------------------------
    # (c2, r)-major -> (r, c2)-major so the hidden layout is already "shuffled".
    wg_p = wg.reshape(2 * c, c, r).transpose(0, 2, 1).reshape(2 * c, cr)
    bg_p = bg.reshape(c, r).T.reshape(cr)
    wg_self, wg_nbr = wg_p[:c], wg_p[c:]
    wg_selfdiff = wg_self - wg_nbr        # exact: max_j((xj-xi)@Wn) = max_j(xj@Wn) - xi@Wn

    # --- fold the EdgeConv bias through the final linear -----------------------
    # out_chunk = (h_chunk + bg_chunk) @ W_lin + b_lin = h_chunk @ W_lin + btot_chunk
    btot = (bg_p.reshape(r, c) @ wl + bl[None, :]).reshape(1, r * c_out).astype(jnp.float32)

    # --- node-axis padding so any N works with a large tile --------------------
    tile = _round_up(max(8, min(tile_n, _round_up(n, 8))), 8)
    n_pad = _round_up(n, tile)
    if n_pad != n:
        x_p = jnp.pad(x, ((0, n_pad - n), (0, 0)))
        xj_p = jnp.pad(xj, ((0, 0), (0, n_pad - n), (0, 0)))
    else:
        x_p, xj_p = x, xj

    # Optional low-precision matmul inputs (accumulation stays f32 in-kernel).
    if matmul_dtype is not None:
        x_p = x_p.astype(matmul_dtype)
        xj_p = xj_p.astype(matmul_dtype)
        wg_selfdiff = wg_selfdiff.astype(matmul_dtype)
        wg_nbr = wg_nbr.astype(matmul_dtype)
        wl_m = wl.astype(matmul_dtype)
    else:
        wl_m = wl

    grid = (n_pad // tile,)
    out_wide = pl.pallas_call(
        _node_shuffle_kernel,
        out_shape=jax.ShapeDtypeStruct((n_pad, r * c_out), x.dtype),
        grid_spec=pltpu.PrefetchScalarGridSpec(
            num_scalar_prefetch=0,
            grid=grid,
            in_specs=[
                pl.BlockSpec((tile, c), lambda i: (i, 0)),            # x
                pl.BlockSpec((k, tile, c), lambda i: (0, i, 0)),      # xj (neighbor-major)
                pl.BlockSpec((c, cr), lambda i: (0, 0)),              # W_self - W_nbr
                pl.BlockSpec((c, cr), lambda i: (0, 0)),              # W_nbr
                pl.BlockSpec((c, c_out), lambda i: (0, 0)),           # W_lin
                pl.BlockSpec((1, r * c_out), lambda i: (0, 0)),       # folded bias
            ],
            out_specs=pl.BlockSpec((tile, r * c_out), lambda i: (i, 0)),
        ),
        compiler_params=pltpu.CompilerParams(
            dimension_semantics=("parallel",),
            vmem_limit_bytes=64 * 1024 * 1024,
        ),
    )(x_p, xj_p, wg_selfdiff, wg_nbr, wl_m, btot)

    # Drop node padding, then (N, r*C_out) -> (r*N, C_out): free row-major reshape.
    return out_wide[:n].reshape(n * r, c_out)


def node_shuffle_ref(x, wg, bg, wl, bl, *, k, r):
    """Pure-JAX reference mirroring the PyTorch forward."""
    n, c = x.shape
    idx = _knn_indices(x, k)                                          # (N, k)
    xj = x[idx]                                                       # (N, k, C)
    xi = jnp.broadcast_to(x[:, None, :], (n, k, c))
    e = jnp.concatenate([xi, xj - xi], axis=-1)                       # (N, k, 2C)
    h = jnp.max(jnp.einsum("nke,ed->nkd", e, wg) + bg, axis=1)        # (N, C*r)
    shuffled = h.reshape(n, c, r).transpose(0, 2, 1).reshape(n * r, c)  # PointShuffle
    return shuffled @ wl + bl                                         # (r*N, C_out)


if __name__ == "__main__":
    # Small, deterministic configuration.
    N, C_IN, C_OUT, K, R = 16, 8, 16, 8, 2

    key = jax.random.PRNGKey(0)
    kx, kwg, kbg, kwl, kbl = jax.random.split(key, 5)

    x = jax.random.normal(kx, (N, C_IN), dtype=jnp.float32)
    # EdgeConv linear: Linear(2*C_IN, C_IN*R)  (stored as (in, out))
    wg = 0.1 * jax.random.normal(kwg, (2 * C_IN, C_IN * R), dtype=jnp.float32)
    bg = 0.1 * jax.random.normal(kbg, (C_IN * R,), dtype=jnp.float32)
    # Final Linear(C_IN, C_OUT)  (stored as (in, out))
    wl = 0.1 * jax.random.normal(kwl, (C_IN, C_OUT), dtype=jnp.float32)
    bl = 0.1 * jax.random.normal(kbl, (C_OUT,), dtype=jnp.float32)

    out = node_shuffle(x, wg, bg, wl, bl, k=K, r=R, tile_n=256)
    out = jax.block_until_ready(out)
    assert out.shape == (R * N, C_OUT), out.shape

    ref = node_shuffle_ref(x, wg, bg, wl, bl, k=K, r=R)
    assert jnp.allclose(out, ref, rtol=1e-3, atol=1e-3), float(
        jnp.max(jnp.abs(out - ref)))

    print("KERNEL_OK")
</pallas_src>

<mosaic_0001>
module attributes {stable_mosaic.version = 11 : i64} {
  func.func @_node_shuffle_kernel(%arg0: i32, %arg1: memref<16x8xf32, #tpu.memory_space<vmem>>, %arg2: memref<8x16x8xf32, #tpu.memory_space<vmem>>, %arg3: memref<8x16xf32, #tpu.memory_space<vmem>>, %arg4: memref<8x16xf32, #tpu.memory_space<vmem>>, %arg5: memref<8x16xf32, #tpu.memory_space<vmem>>, %arg6: memref<1x32xf32, #tpu.memory_space<vmem>>, %arg7: memref<16x32xf32, #tpu.memory_space<vmem>>) attributes {dimension_semantics = [#tpu.dimension_semantics<parallel>], iteration_bounds = array<i64: 1>, scalar_prefetch = 0 : i64, scratch_operands = 0 : i64, tpu.core_type = #tpu.core_type<tc>, window_params = [{transform_indices = @transform_0, window_bounds = array<i64: 16, 8>}, {transform_indices = @transform_1, window_bounds = array<i64: 8, 16, 8>}, {pipeline_mode = #tpu.pipeline_mode<synchronous>, transform_indices = @transform_2, window_bounds = array<i64: 8, 16>}, {pipeline_mode = #tpu.pipeline_mode<synchronous>, transform_indices = @transform_3, window_bounds = array<i64: 8, 16>}, {pipeline_mode = #tpu.pipeline_mode<synchronous>, transform_indices = @transform_4, window_bounds = array<i64: 8, 16>}, {pipeline_mode = #tpu.pipeline_mode<synchronous>, transform_indices = @transform_5, window_bounds = array<i64: 1, 32>}, {transform_indices = @transform_6, window_bounds = array<i64: 16, 32>}]} {
    %c0 = arith.constant 0 : index
    %c0_0 = arith.constant 0 : index
    %0 = vector.load %arg1[%c0, %c0_0] : memref<16x8xf32, #tpu.memory_space<vmem>>, vector<16x8xf32>
    %c0_1 = arith.constant 0 : index
    %c0_2 = arith.constant 0 : index
    %1 = vector.load %arg3[%c0_1, %c0_2] : memref<8x16xf32, #tpu.memory_space<vmem>>, vector<8x16xf32>
    %cst = arith.constant dense<0.000000e+00> : vector<16x16xf32>
    %2 = tpu.matmul %0, %1, %cst {dimension_numbers = #tpu.dot_dimension_numbers<[1], [0], [0], [1], [0, 0, 1, 1], [], []>} : vector<16x8xf32>, vector<8x16xf32>, vector<16x16xf32> -> vector<16x16xf32>
    %c0_3 = arith.constant 0 : index
    %c0_4 = arith.constant 0 : index
    %c0_5 = arith.constant 0 : index
    %3 = vector.load %arg2[%c0_3, %c0_4, %c0_5] : memref<8x16x8xf32, #tpu.memory_space<vmem>>, vector<8x16x8xf32>
    %4 = vector.shape_cast %3 : vector<8x16x8xf32> to vector<128x8xf32>
    %c0_6 = arith.constant 0 : index
    %c0_7 = arith.constant 0 : index
    %5 = vector.load %arg4[%c0_6, %c0_7] : memref<8x16xf32, #tpu.memory_space<vmem>>, vector<8x16xf32>
    %cst_8 = arith.constant dense<0.000000e+00> : vector<128x16xf32>
    %6 = tpu.matmul %4, %5, %cst_8 {dimension_numbers = #tpu.dot_dimension_numbers<[1], [0], [0], [1], [0, 0, 1, 1], [], []>} : vector<128x8xf32>, vector<8x16xf32>, vector<128x16xf32> -> vector<128x16xf32>
    %7 = vector.extract_strided_slice %6 {offsets = [0, 0], sizes = [16, 16], strides = [1, 1]} : vector<128x16xf32> to vector<16x16xf32>
    %8 = vector.extract_strided_slice %6 {offsets = [16, 0], sizes = [16, 16], strides = [1, 1]} : vector<128x16xf32> to vector<16x16xf32>
    %9 = arith.maximumf %7, %8 : vector<16x16xf32>
    %10 = vector.extract_strided_slice %6 {offsets = [32, 0], sizes = [16, 16], strides = [1, 1]} : vector<128x16xf32> to vector<16x16xf32>
    %11 = arith.maximumf %9, %10 : vector<16x16xf32>
    %12 = vector.extract_strided_slice %6 {offsets = [48, 0], sizes = [16, 16], strides = [1, 1]} : vector<128x16xf32> to vector<16x16xf32>
    %13 = arith.maximumf %11, %12 : vector<16x16xf32>
    %14 = vector.extract_strided_slice %6 {offsets = [64, 0], sizes = [16, 16], strides = [1, 1]} : vector<128x16xf32> to vector<16x16xf32>
    %15 = arith.maximumf %13, %14 : vector<16x16xf32>
    %16 = vector.extract_strided_slice %6 {offsets = [80, 0], sizes = [16, 16], strides = [1, 1]} : vector<128x16xf32> to vector<16x16xf32>
    %17 = arith.maximumf %15, %16 : vector<16x16xf32>
    %18 = vector.extract_strided_slice %6 {offsets = [96, 0], sizes = [16, 16], strides = [1, 1]} : vector<128x16xf32> to vector<16x16xf32>
    %19 = arith.maximumf %17, %18 : vector<16x16xf32>
    %20 = vector.extract_strided_slice %6 {offsets = [112, 0], sizes = [16, 16], strides = [1, 1]} : vector<128x16xf32> to vector<16x16xf32>
    %21 = arith.maximumf %19, %20 : vector<16x16xf32>
    %22 = arith.addf %2, %21 : vector<16x16xf32>
    %c0_9 = arith.constant 0 : index
    %c0_10 = arith.constant 0 : index
    %23 = vector.load %arg5[%c0_9, %c0_10] : memref<8x16xf32, #tpu.memory_space<vmem>>, vector<8x16xf32>
    %24 = vector.extract_strided_slice %22 {offsets = [0, 0], sizes = [16, 8], strides = [1, 1]} : vector<16x16xf32> to vector<16x8xf32>
    %cst_11 = arith.constant dense<0.000000e+00> : vector<16x16xf32>
    %25 = tpu.matmul %24, %23, %cst_11 {dimension_numbers = #tpu.dot_dimension_numbers<[1], [0], [0], [1], [0, 0, 1, 1], [], []>} : vector<16x8xf32>, vector<8x16xf32>, vector<16x16xf32> -> vector<16x16xf32>
    %26 = vector.extract_strided_slice %22 {offsets = [0, 8], sizes = [16, 8], strides = [1, 1]} : vector<16x16xf32> to vector<16x8xf32>
    %cst_12 = arith.constant dense<0.000000e+00> : vector<16x16xf32>
    %27 = tpu.matmul %26, %23, %cst_12 {dimension_numbers = #tpu.dot_dimension_numbers<[1], [0], [0], [1], [0, 0, 1, 1], [], []>} : vector<16x8xf32>, vector<8x16xf32>, vector<16x16xf32> -> vector<16x16xf32>
    %28 = tpu.concatenate %25, %27 in 1 : vector<16x16xf32>, vector<16x16xf32> -> vector<16x32xf32>
    %c0_13 = arith.constant 0 : index
    %c0_14 = arith.constant 0 : index
    %29 = vector.load %arg6[%c0_13, %c0_14] : memref<1x32xf32, #tpu.memory_space<vmem>>, vector<1x32xf32>
    %30 = vector.broadcast %29 : vector<1x32xf32> to vector<16x32xf32>
    %31 = arith.addf %28, %30 : vector<16x32xf32>
    %c0_15 = arith.constant 0 : index
    %c0_16 = arith.constant 0 : index
    %32 = vector.load %arg7[%c0_15, %c0_16] : memref<16x32xf32, #tpu.memory_space<vmem>>, vector<16x32xf32>
    tpu.vector_store %arg7[%c0_15, %c0_16], %31 {strides = array<i32>} : memref<16x32xf32, #tpu.memory_space<vmem>>, vector<16x32xf32>,
    return
  }
  func.func @transform_0(%arg0: i32) -> (i32, i32) {
    %c0_i32 = arith.constant 0 : i32
    %c0_i32_0 = arith.constant 0 : i32
    return %arg0, %c0_i32 : i32, i32
  }
  func.func @transform_1(%arg0: i32) -> (i32, i32, i32) {
    %c0_i32 = arith.constant 0 : i32
    %c0_i32_0 = arith.constant 0 : i32
    %c0_i32_1 = arith.constant 0 : i32
    return %c0_i32, %arg0, %c0_i32_0 : i32, i32, i32
  }
  func.func @transform_2(%arg0: i32) -> (i32, i32) {
    %c0_i32 = arith.constant 0 : i32
    %c0_i32_0 = arith.constant 0 : i32
    %c0_i32_1 = arith.constant 0 : i32
    return %c0_i32, %c0_i32_0 : i32, i32
  }
  func.func @transform_3(%arg0: i32) -> (i32, i32) {
    %c0_i32 = arith.constant 0 : i32
    %c0_i32_0 = arith.constant 0 : i32
    %c0_i32_1 = arith.constant 0 : i32
    return %c0_i32, %c0_i32_0 : i32, i32
  }
  func.func @transform_4(%arg0: i32) -> (i32, i32) {
    %c0_i32 = arith.constant 0 : i32
    %c0_i32_0 = arith.constant 0 : i32
    %c0_i32_1 = arith.constant 0 : i32
    return %c0_i32, %c0_i32_0 : i32, i32
  }
  func.func @transform_5(%arg0: i32) -> (i32, i32) {
    %c0_i32 = arith.constant 0 : i32
    %c0_i32_0 = arith.constant 0 : i32
    %c0_i32_1 = arith.constant 0 : i32
    return %c0_i32, %c0_i32_0 : i32, i32
  }
  func.func @transform_6(%arg0: i32) -> (i32, i32) {
    %c0_i32 = arith.constant 0 : i32
    %c0_i32_0 = arith.constant 0 : i32
    return %arg0, %c0_i32 : i32, i32
  }
}

</mosaic_0001>

<llo_original>
// kernel: sub.3
$region0: #{sub.3}
  #allocation2 [shape = 's32[1]{0}', space=sflag, size = 0x4, scoped, tag = 'scoped memory for sub.3']
  %s0 = inlined_call_operand.vmem [shape: f32[8,16], index: 0, kind: input, shape index: {}]
  %s1 = inlined_call_operand.vmem [shape: f32[8,16], index: 1, kind: input, shape index: {}]
  %s2 = inlined_call_operand.hbm [shape: f32[8,16], index: 2, kind: output, shape index: {}]
  $region1: #{sub.3} parent=0
    #allocation0 [shape = 'u8[4096]{0}', space=vmem, size = 0x1000, scoped, tag = 'operand span for operand 2']
    #allocation1 [shape = 's32[1]{0}', space=sflag, size = 0x4, scoped, tag = 'scoped memory for sub.3']
    %3 = vsyncpa [#allocation1], 0
    %v4 = vld [vmem:[%s0] sm:$0xff]
    %v5 = vld [vmem:[%s1] sm:$0xff]
    %6 = xla_tuple %v4, %v5
    %7 = xla_tuple %6
    %v8 = vsub.f32 %v4, %v5
    %9 = xla_tuple %v8
    %10 = vst [vmem:[#allocation0] sm:$0xff] %v8
    %s12 = ssub.s32 128, 128
    %13 = vsyncadd [#allocation1], %s12
    %s15 = sshll.u32 [#allocation0], 4
    %s16 = int_to_ptr.vmem [resolvable:$true] %s15
    %18 = dma.vmem_to_hbm [thread:$0]  %s16, 128, %s2, [#allocation1]
    %19 = dma.done [#allocation1], 128
    %20 = vsyncpa [#allocation1], 1

// kernel: node_shuffle.1
$region0: #{node_shuffle.1}
  #allocation0 [shape = 'u32[]', space=smem, size = 0x4, offset = 0x4, fixed_abs, tag = 'smem constant byte address 0x4 - core index']
  #allocation1 [shape = 'u32[144,128]{1,0:T(1,128)}', space=vmem, size = 0x12000, scoped, tag = 'internal scratch']
  %s0 = inlined_call_operand.hbm [shape: f32[16,8], index: 0, kind: input, shape index: {}]
  %s1 = inlined_call_operand.hbm [shape: f32[8,16,8], index: 1, kind: input, shape index: {}]
  %s2 = inlined_call_operand.hbm [shape: f32[8,16], index: 2, kind: input, shape index: {}]
  %s3 = inlined_call_operand.hbm [shape: f32[8,16], index: 3, kind: input, shape index: {}]
  %s4 = inlined_call_operand.hbm [shape: f32[8,16], index: 4, kind: input, shape index: {}]
  %s5 = inlined_call_operand.hbm [shape: f32[1,32], index: 5, kind: input, shape index: {}]
  %s6 = inlined_call_operand.hbm [shape: f32[16,32], index: 6, kind: output, shape index: {}]
  %s7 = sld [smem:[#allocation0]]
  $region58: #{node_shuffle.1} parent=0
    _
  %s9 = ssub.s32 1, %s7
  %s10 = scalar_select 0, %s9, %s7
  $region1: #{node_shuffle.1} parent=0
    #allocation2 [shape = 'u8[8192]{0}', space=vmem, size = 0x2000, scoped, tag = 'input window, operand 0, single buffered']
    #allocation3 [shape = 's32[1]{0}', space=sflag, size = 0x4, scoped, tag = 'scoped memory for node_shuffle.1']
    #allocation4 [shape = 's32[1]{0}', space=sflag, size = 0x4, scoped, tag = 'scoped memory for node_shuffle.1']
    #allocation5 [shape = 'u8[65536]{0}', space=vmem, size = 0x10000, scoped, tag = 'input window, operand 1, single buffered']
    #allocation6 [shape = 's32[1]{0}', space=sflag, size = 0x4, scoped, tag = 'scoped memory for node_shuffle.1']
    #allocation7 [shape = 'u8[4096]{0}', space=vmem, size = 0x1000, scoped, tag = 'input window, operand 2, single buffered']
    #allocation8 [shape = 'u8[4096]{0}', space=vmem, size = 0x1000, scoped, tag = 'input window, operand 3, single buffered']
    #allocation9 [shape = 's32[1]{0}', space=sflag, size = 0x4, scoped, tag = 'scoped memory for node_shuffle.1']
    #allocation10 [shape = 'u8[4096]{0}', space=vmem, size = 0x1000, scoped, tag = 'input window, operand 4, single buffered']
    #allocation11 [shape = 'u8[512]{0}', space=vmem, size = 0x400, scoped, tag = 'input window, operand 5, single buffered']
    #allocation12 [shape = 's32[1]{0}', space=sflag, size = 0x4, scoped, tag = 'scoped memory for node_shuffle.1']
    #allocation13 [shape = 'u8[8192]{0}', space=vmem, size = 0x2000, scoped, tag = 'output window, operand 0, single buffered']
    %11 = vsyncpa [#allocation3], 0
    %12 = vsyncpa [#allocation6], 0
    %13 = vsyncpa [#allocation9], 0
    %14 = vsyncpa [#allocation12], 0
    %15 = vsyncpa [#allocation4], 0
    // Predicated region
    $region2: #{node_shuffle.1} parent=1 // pred_check
      _
    $region3: #{node_shuffle.1} parent=1 // pred_check_branch
      %17 = sbr.rel (0) target = $region5
    $region4: #{node_shuffle.1} parent=1 // pred_region
      %s19 = ssub.s32 256, 256
      %20 = vsyncadd [#allocation3], %s19
      %s21 = sshll.u32 [#allocation2], 4
      %s22 = int_to_ptr.vmem [resolvable:$true] %s21
      %27 = dma.hbm_to_vmem [thread:$0]  %s0, 256, %s22, [#allocation3], 128, 128, 8
    $region5: #{node_shuffle.1} parent=1 // pred_fallthru
      _
    // Predicated region
    $region6: #{node_shuffle.1} parent=1 // pred_check
      _
    $region7: #{node_shuffle.1} parent=1 // pred_check_branch
      %29 = sbr.rel (0) target = $region9
    $region8: #{node_shuffle.1} parent=1 // pred_region
      %s31 = ssub.s32 2048, 2048
      %32 = vsyncadd [#allocation6], %s31
      %s33 = sshll.u32 [#allocation5], 4
      %s34 = int_to_ptr.vmem [resolvable:$true] %s33
      %39 = dma.hbm_to_vmem [thread:$0]  %s1, 2048, %s34, [#allocation6], 128, 128, 8
    $region9: #{node_shuffle.1} parent=1 // pred_fallthru
      _
    // Predicated region
    $region10: #{node_shuffle.1} parent=1 // pred_check
      _
    $region11: #{node_shuffle.1} parent=1 // pred_check_branch
      %41 = sbr.rel (0) target = $region13
    $region12: #{node_shuffle.1} parent=1 // pred_region
      %s43 = ssub.s32 128, 128
      %44 = vsyncadd [#allocation6], %s43
      %s46 = sshll.u32 [#allocation7], 4
      %s47 = int_to_ptr.vmem [resolvable:$true] %s46
      %49 = dma.hbm_to_vmem [thread:$0]  %s2, 128, %s47, [#allocation6]
    $region13: #{node_shuffle.1} parent=1 // pred_fallthru
      _
    // Predicated region
    $region14: #{node_shuffle.1} parent=1 // pred_check
      _
    $region15: #{node_shuffle.1} parent=1 // pred_check_branch
      %51 = sbr.rel (0) target = $region17
    $region16: #{node_shuffle.1} parent=1 // pred_region
      %s53 = ssub.s32 128, 128
      %54 = vsyncadd [#allocation9], %s53
      %s56 = sshll.u32 [#allocation8], 4
      %s57 = int_to_ptr.vmem [resolvable:$true] %s56
      %59 = dma.hbm_to_vmem [thread:$0]  %s3, 128, %s57, [#allocation9]
    $region17: #{node_shuffle.1} parent=1 // pred_fallthru
      _
    // Predicated region
    $region18: #{node_shuffle.1} parent=1 // pred_check
      _
    $region19: #{node_shuffle.1} parent=1 // pred_check_branch
      %61 = sbr.rel (0) target = $region21
    $region20: #{node_shuffle.1} parent=1 // pred_region
      %s63 = ssub.s32 128, 128
      %64 = vsyncadd [#allocation9], %s63
      %s66 = sshll.u32 [#allocation10], 4
      %s67 = int_to_ptr.vmem [resolvable:$true] %s66
      %69 = dma.hbm_to_vmem [thread:$0]  %s4, 128, %s67, [#allocation9]
    $region21: #{node_shuffle.1} parent=1 // pred_fallthru
      _
    // Predicated region
    $region22: #{node_shuffle.1} parent=1 // pred_check
      _
    $region23: #{node_shuffle.1} parent=1 // pred_check_branch
      %71 = sbr.rel (0) target = $region25
    $region24: #{node_shuffle.1} parent=1 // pred_region
      %s73 = ssub.s32 16, 16
      %74 = vsyncadd [#allocation12], %s73
      %s76 = sshll.u32 [#allocation11], 4
      %s77 = int_to_ptr.vmem [resolvable:$true] %s76
      %79 = dma.hbm_to_vmem [thread:$0]  %s5, 16, %s77, [#allocation12]
    $region25: #{node_shuffle.1} parent=1 // pred_fallthru
      _
    // Predicated region
    $region26: #{node_shuffle.1} parent=1 // pred_check
      _
    $region27: #{node_shuffle.1} parent=1 // pred_check_branch
      %81 = sbr.rel (0) target = $region29
    $region28: #{node_shuffle.1} parent=1 // pred_region
      %82 = dma.done [#allocation3], 256
    $region29: #{node_shuffle.1} parent=1 // pred_fallthru
      _
    // Predicated region
    $region30: #{node_shuffle.1} parent=1 // pred_check
      _
    $region31: #{node_shuffle.1} parent=1 // pred_check_branch
      %84 = sbr.rel (0) target = $region33
    $region32: #{node_shuffle.1} parent=1 // pred_region
      %85 = dma.done [#allocation6], 2048
    $region33: #{node_shuffle.1} parent=1 // pred_fallthru
      _
    // Predicated region
    $region34: #{node_shuffle.1} parent=1 // pred_check
      _
    $region35: #{node_shuffle.1} parent=1 // pred_check_branch
      %87 = sbr.rel (0) target = $region37
    $region36: #{node_shuffle.1} parent=1 // pred_region
      %88 = dma.done [#allocation6], 128
    $region37: #{node_shuffle.1} parent=1 // pred_fallthru
      _
    // Predicated region
    $region38: #{node_shuffle.1} parent=1 // pred_check
      _
    $region39: #{node_shuffle.1} parent=1 // pred_check_branch
      %90 = sbr.rel (0) target = $region41
    $region40: #{node_shuffle.1} parent=1 // pred_region
      %91 = dma.done [#allocation9], 128
    $region41: #{node_shuffle.1} parent=1 // pred_fallthru
      _
    // Predicated region
    $region42: #{node_shuffle.1} parent=1 // pred_check
      _
    $region43: #{node_shuffle.1} parent=1 // pred_check_branch
      %93 = sbr.rel (0) target = $region45
    $region44: #{node_shuffle.1} parent=1 // pred_region
      %94 = dma.done [#allocation9], 128
    $region45: #{node_shuffle.1} parent=1 // pred_fallthru
      _
    // Predicated region
    $region46: #{node_shuffle.1} parent=1 // pred_check
      _
    $region47: #{node_shuffle.1} parent=1 // pred_check_branch
      %96 = sbr.rel (0) target = $region49
    $region48: #{node_shuffle.1} parent=1 // pred_region
      %97 = dma.done [#allocation12], 16
    $region49: #{node_shuffle.1} parent=1 // pred_fallthru
      _
    %v98 = vld [vmem:[#allocation2] sm:$0xff]
    %v99 = vld [vmem:[#allocation2 + $0x8] sm:$0xff]
    %v100 = vld [vmem:[#allocation7] sm:$0xff]
    %v101 = vld [vmem:[#allocation5] sm:$0xff]
    %v102 = vld [vmem:[#allocation5 + $0x8] sm:$0xff]
    %v103 = vld [vmem:[#allocation5 + $0x10] sm:$0xff]
    %v104 = vld [vmem:[#allocation5 + $0x18] sm:$0xff]
    %v105 = vld [vmem:[#allocation5 + $0x20] sm:$0xff]
    %v106 = vld [vmem:[#allocation5 + $0x28] sm:$0xff]
    %v107 = vld [vmem:[#allocation5 + $0x30] sm:$0xff]
    %v108 = vld [vmem:[#allocation5 + $0x38] sm:$0xff]
    %v109 = vld [vmem:[#allocation5 + $0x40] sm:$0xff]
    %v110 = vld [vmem:[#allocation5 + $0x48] sm:$0xff]
    %v111 = vld [vmem:[#allocation5 + $0x50] sm:$0xff]
    %v112 = vld [vmem:[#allocation5 + $0x58] sm:$0xff]
    %v113 = vld [vmem:[#allocation5 + $0x60] sm:$0xff]
    %v114 = vld [vmem:[#allocation5 + $0x68] sm:$0xff]
    %v115 = vld [vmem:[#allocation5 + $0x70] sm:$0xff]
    %v116 = vld [vmem:[#allocation5 + $0x78] sm:$0xff]
    %v117 = vld [vmem:[#allocation8] sm:$0xff]
    %vm118 = vcmask 64512
    %v120 = vsel %vm118, %v101, 0
    %v123 = vsel %vm118, %v102, 0
    %v126 = vsel %vm118, %v103, 0
    %v129 = vsel %vm118, %v104, 0
    %v132 = vsel %vm118, %v105, 0
    %v135 = vsel %vm118, %v106, 0
    %v138 = vsel %vm118, %v107, 0
    %v141 = vsel %vm118, %v108, 0
    %v144 = vsel %vm118, %v109, 0
    %v147 = vsel %vm118, %v110, 0
    %v150 = vsel %vm118, %v111, 0
    %v153 = vsel %vm118, %v112, 0
    %v156 = vsel %vm118, %v113, 0
    %v159 = vsel %vm118, %v114, 0
    %v162 = vsel %vm118, %v115, 0
    %v165 = vsel %vm118, %v116, 0
    %167 = vmatprep.subr.mxu0 0.0
    %168 = vmatpush1.msra.mxu0 %v117
    %169 = vmatprep.subr.mxu0 0.0
    %170 = vmatpush1.msra.mxu0 0.0
    %171 = vmatprep.subr.mxu0 0.0
    %172 = vmatpush1.msra.mxu0 0.0
    %173 = vmatprep.subr.mxu0 0.0
    %174 = vmatpush1.msra.mxu0 0.0
    %175 = vmatprep.subr.mxu0 0.0
    %176 = vmatpush1.msra.mxu0 0.0
    %177 = vmatprep.subr.mxu0 0.0
    %178 = vmatpush1.msra.mxu0 0.0
    %179 = vmatprep.subr.mxu0 0.0
    %180 = vmatpush1.msra.mxu0 0.0
    %181 = vmatprep.subr.mxu0 0.0
    %182 = vmatpush1.msra.mxu0 0.0
    %183 = vmatprep.subr.mxu0 0.0
    %184 = vmatpush1.msra.mxu0 0.0
    %185 = vmatprep.subr.mxu0 0.0
    %186 = vmatpush1.msra.mxu0 0.0
    %187 = vmatprep.subr.mxu0 0.0
    %188 = vmatpush1.msra.mxu0 0.0
    %189 = vmatprep.subr.mxu0 0.0
    %190 = vmatpush1.msra.mxu0 0.0
    %191 = vmatprep.subr.mxu0 0.0
    %192 = vmatpush1.msra.mxu0 0.0
    %193 = vmatprep.subr.mxu0 0.0
    %194 = vmatpush1.msra.mxu0 0.0
    %195 = vmatprep.subr.mxu0 0.0
    %196 = vmatpush1.msra.mxu0 0.0
    %197 = vmatprep.subr.mxu0 0.0
    %198 = vmatpush1.msra.mxu0 0.0
    %199 = vmatprep.subr.mxu0 0.0
    %200 = vmatpush1.msra.mxu0 0.0
    %201 = vmatprep.subr.mxu0 0.0
    %202 = vmatpush1.msra.mxu0 0.0
    %203 = vmatprep.subr.mxu0 0.0
    %204 = vmatpush1.msra.mxu0 0.0
    %205 = vmatprep.subr.mxu0 0.0
    %206 = vmatpush1.msra.mxu0 0.0
    %207 = vmatprep.subr.mxu0 0.0
    %208 = vmatpush1.msra.mxu0 0.0
    %209 = vmatprep.subr.mxu0 0.0
    %210 = vmatpush1.msra.mxu0 0.0
    %211 = vmatprep.subr.mxu0 0.0
    %212 = vmatpush1.msra.mxu0 0.0
    %213 = vmatprep.subr.mxu0 0.0
    %214 = vmatpush1.msra.mxu0 0.0
    %215 = vmatprep.subr.mxu0 0.0
    %216 = vmatpush1.msra.mxu0 0.0
    %217 = vmatprep.subr.mxu0 0.0
    %218 = vmatpush1.msra.mxu0 0.0
    %219 = vmatprep.subr.mxu0 0.0
    %220 = vmatpush1.msra.mxu0 0.0
    %221 = vmatprep.subr.mxu0 0.0
    %222 = vmatpush1.msra.mxu0 0.0
    %223 = vmatprep.subr.mxu0 0.0
    %224 = vmatpush1.msra.mxu0 0.0
    %225 = vmatprep.subr.mxu0 0.0
    %226 = vmatpush1.msra.mxu0 0.0
    %227 = vmatprep.subr.mxu0 0.0
    %228 = vmatpush1.msra.mxu0 0.0
    %229 = vmatprep.subr.mxu0 0.0
    %230 = vmatpush1.msra.mxu0 0.0
    %231 = vmatprep.mubr.f32.mxu0 0.0
    %232 = vmatmul.mubr.f32.gmra.mrb[0].mxu0 %v120
    %v233 = vpop.f32.mrb[0].mxu0
    %v234 = vadd.f32 0.0, %v233
    %v235 = vpop.f32.mrb[0].mxu0
    %236 = vmatprep.mubr.f32.mxu0 0.0
    %237 = vmatmul.mubr.f32.gmra.mrb[0].mxu0 %v123
    %v238 = vpop.f32.mrb[0].mxu0
    %v239 = vadd.f32 0.0, %v238
    %v240 = vpop.f32.mrb[0].mxu0
    %241 = vmatprep.mubr.f32.mxu0 0.0
    %242 = vmatmul.mubr.f32.gmra.mrb[0].mxu0 %v126
    %v243 = vpop.f32.mrb[0].mxu0
    %v244 = vadd.f32 0.0, %v243
    %v245 = vpop.f32.mrb[0].mxu0
    %246 = vmatprep.mubr.f32.mxu0 0.0
    %247 = vmatmul.mubr.f32.gmra.mrb[0].mxu0 %v129
    %v248 = vpop.f32.mrb[0].mxu0
    %v249 = vadd.f32 0.0, %v248
    %v250 = vpop.f32.mrb[0].mxu0
    %251 = vmatprep.mubr.f32.mxu0 0.0
    %252 = vmatmul.mubr.f32.gmra.mrb[0].mxu0 %v132
    %v253 = vpop.f32.mrb[0].mxu0
    %v254 = vadd.f32 0.0, %v253
    %v255 = vpop.f32.mrb[0].mxu0
    %256 = vmatprep.mubr.f32.mxu0 0.0
    %257 = vmatmul.mubr.f32.gmra.mrb[0].mxu0 %v135
    %v258 = vpop.f32.mrb[0].mxu0
    %v259 = vadd.f32 0.0, %v258
    %v260 = vpop.f32.mrb[0].mxu0
    %261 = vmatprep.mubr.f32.mxu0 0.0
    %262 = vmatmul.mubr.f32.gmra.mrb[0].mxu0 %v138
    %v263 = vpop.f32.mrb[0].mxu0
    %v264 = vadd.f32 0.0, %v263
    %v265 = vpop.f32.mrb[0].mxu0
    %266 = vmatprep.mubr.f32.mxu0 0.0
    %267 = vmatmul.mubr.f32.gmra.mrb[0].mxu0 %v141
    %v268 = vpop.f32.mrb[0].mxu0
    %v269 = vadd.f32 0.0, %v268
    %v270 = vpop.f32.mrb[0].mxu0
    %271 = vmatprep.mubr.f32.mxu0 0.0
    %272 = vmatmul.mubr.f32.gmra.mrb[0].mxu0 %v144
    %v273 = vpop.f32.mrb[0].mxu0
    %v274 = vadd.f32 0.0, %v273
    %v275 = vpop.f32.mrb[0].mxu0
    %276 = vmatprep.mubr.f32.mxu0 0.0
    %277 = vmatmul.mubr.f32.gmra.mrb[0].mxu0 %v147
    %v278 = vpop.f32.mrb[0].mxu0
    %v279 = vadd.f32 0.0, %v278
    %v280 = vpop.f32.mrb[0].mxu0
    %281 = vmatprep.mubr.f32.mxu0 0.0
    %282 = vmatmul.mubr.f32.gmra.mrb[0].mxu0 %v150
    %v283 = vpop.f32.mrb[0].mxu0
    %v284 = vadd.f32 0.0, %v283
    %v285 = vpop.f32.mrb[0].mxu0
    %286 = vmatprep.mubr.f32.mxu0 0.0
    %287 = vmatmul.mubr.f32.gmra.mrb[0].mxu0 %v153
    %v288 = vpop.f32.mrb[0].mxu0
    %v289 = vadd.f32 0.0, %v288
    %v290 = vpop.f32.mrb[0].mxu0
    %291 = vmatprep.mubr.f32.mxu0 0.0
    %292 = vmatmul.mubr.f32.gmra.mrb[0].mxu0 %v156
    %v293 = vpop.f32.mrb[0].mxu0
    %v294 = vadd.f32 0.0, %v293
    %v295 = vpop.f32.mrb[0].mxu0
    %296 = vmatprep.mubr.f32.mxu0 0.0
    %297 = vmatmul.mubr.f32.gmra.mrb[0].mxu0 %v159
    %v298 = vpop.f32.mrb[0].mxu0
    %v299 = vadd.f32 0.0, %v298
    %v300 = vpop.f32.mrb[0].mxu0
    %301 = vmatprep.mubr.f32.mxu0 0.0
    %302 = vmatmul.mubr.f32.gmra.mrb[0].mxu0 %v162
    %v303 = vpop.f32.mrb[0].mxu0
    %v304 = vadd.f32 0.0, %v303
    %v305 = vpop.f32.mrb[0].mxu0
    %306 = vmatprep.mubr.f32.mxu0 0.0
    %307 = vmatmul.mubr.f32.gmra.mrb[0].mxu0 %v165
    %v308 = vpop.f32.mrb[0].mxu0
    %v309 = vadd.f32 0.0, %v308
    %v310 = vpop.f32.mrb[0].mxu0
    %311 = vdwg.mxu0
    %v312 = vmax.f32 %v234, %v244
    %v313 = vmax.f32 %v239, %v249
    %v314 = vmax.f32 %v312, %v254
    %v315 = vmax.f32 %v313, %v259
    %v316 = vmax.f32 %v314, %v264
    %v317 = vmax.f32 %v315, %v269
    %v318 = vmax.f32 %v316, %v274
    %v319 = vmax.f32 %v317, %v279
    %v320 = vmax.f32 %v318, %v284
    %v321 = vmax.f32 %v319, %v289
    %v322 = vmax.f32 %v320, %v294
    %v323 = vmax.f32 %v321, %v299
    %v324 = vmax.f32 %v322, %v304
    %v325 = vmax.f32 %v323, %v309
    %v327 = vsel %vm118, %v98, 0
    %v330 = vsel %vm118, %v99, 0
    %332 = vmatprep.subr.mxu0 0.0
    %333 = vmatpush1.msra.mxu0 %v100
    %334 = vmatprep.subr.mxu0 0.0
    %335 = vmatpush1.msra.mxu0 0.0
    %336 = vmatprep.subr.mxu0 0.0
    %337 = vmatpush1.msra.mxu0 0.0
    %338 = vmatprep.subr.mxu0 0.0
    %339 = vmatpush1.msra.mxu0 0.0
    %340 = vmatprep.subr.mxu0 0.0
    %341 = vmatpush1.msra.mxu0 0.0
    %342 = vmatprep.subr.mxu0 0.0
    %343 = vmatpush1.msra.mxu0 0.0
    %344 = vmatprep.subr.mxu0 0.0
    %345 = vmatpush1.msra.mxu0 0.0
    %346 = vmatprep.subr.mxu0 0.0
    %347 = vmatpush1.msra.mxu0 0.0
    %348 = vmatprep.subr.mxu0 0.0
    %349 = vmatpush1.msra.mxu0 0.0
    %350 = vmatprep.subr.mxu0 0.0
    %351 = vmatpush1.msra.mxu0 0.0
    %352 = vmatprep.subr.mxu0 0.0
    %353 = vmatpush1.msra.mxu0 0.0
    %354 = vmatprep.subr.mxu0 0.0
    %355 = vmatpush1.msra.mxu0 0.0
    %356 = vmatprep.subr.mxu0 0.0
    %357 = vmatpush1.msra.mxu0 0.0
    %358 = vmatprep.subr.mxu0 0.0
    %359 = vmatpush1.msra.mxu0 0.0
    %360 = vmatprep.subr.mxu0 0.0
    %361 = vmatpush1.msra.mxu0 0.0
    %362 = vmatprep.subr.mxu0 0.0
    %363 = vmatpush1.msra.mxu0 0.0
    %364 = vmatprep.subr.mxu0 0.0
    %365 = vmatpush1.msra.mxu0 0.0
    %366 = vmatprep.subr.mxu0 0.0
    %367 = vmatpush1.msra.mxu0 0.0
    %368 = vmatprep.subr.mxu0 0.0
    %369 = vmatpush1.msra.mxu0 0.0
    %370 = vmatprep.subr.mxu0 0.0
    %371 = vmatpush1.msra.mxu0 0.0
    %372 = vmatprep.subr.mxu0 0.0
    %373 = vmatpush1.msra.mxu0 0.0
    %374 = vmatprep.subr.mxu0 0.0
    %375 = vmatpush1.msra.mxu0 0.0
    %376 = vmatprep.subr.mxu0 0.0
    %377 = vmatpush1.msra.mxu0 0.0
    %378 = vmatprep.subr.mxu0 0.0
    %379 = vmatpush1.msra.mxu0 0.0
    %380 = vmatprep.subr.mxu0 0.0
    %381 = vmatpush1.msra.mxu0 0.0
    %382 = vmatprep.subr.mxu0 0.0
    %383 = vmatpush1.msra.mxu0 0.0
    %384 = vmatprep.subr.mxu0 0.0
    %385 = vmatpush1.msra.mxu0 0.0
    %386 = vmatprep.subr.mxu0 0.0
    %387 = vmatpush1.msra.mxu0 0.0
    %388 = vmatprep.subr.mxu0 0.0
    %389 = vmatpush1.msra.mxu0 0.0
    %390 = vmatprep.subr.mxu0 0.0
    %391 = vmatpush1.msra.mxu0 0.0
    %392 = vmatprep.subr.mxu0 0.0
    %393 = vmatpush1.msra.mxu0 0.0
    %394 = vmatprep.subr.mxu0 0.0
    %395 = vmatpush1.msra.mxu0 0.0
    %396 = vmatprep.mubr.f32.mxu0 0.0
    %397 = vmatmul.mubr.f32.gmra.mrb[0].mxu0 %v327
    %v398 = vpop.f32.mrb[0].mxu0
    %v399 = vadd.f32 %v324, %v398
    %v400 = vpop.f32.mrb[0].mxu0
    %401 = vmatprep.mubr.f32.mxu0 0.0
    %402 = vmatmul.mubr.f32.gmra.mrb[0].mxu0 %v330
    %v403 = vpop.f32.mrb[0].mxu0
    %v404 = vadd.f32 %v325, %v403
    %v405 = vpop.f32.mrb[0].mxu0
    %406 = vdwg.mxu0
    %v407 = vld [vmem:[#allocation10] sm:$0xff]
    %v409 = vsel %vm118, %v399, 0
    %v412 = vsel %vm118, %v404, 0
    %414 = vmatprep.subr.mxu0 0.0
    %415 = vmatpush1.msra.mxu0 %v407
    %416 = vmatprep.subr.mxu0 0.0
    %417 = vmatpush1.msra.mxu0 0.0
    %418 = vmatprep.subr.mxu0 0.0
    %419 = vmatpush1.msra.mxu0 0.0
    %420 = vmatprep.subr.mxu0 0.0
    %421 = vmatpush1.msra.mxu0 0.0
    %422 = vmatprep.subr.mxu0 0.0
    %423 = vmatpush1.msra.mxu0 0.0
    %424 = vmatprep.subr.mxu0 0.0
    %425 = vmatpush1.msra.mxu0 0.0
    %426 = vmatprep.subr.mxu0 0.0
    %427 = vmatpush1.msra.mxu0 0.0
    %428 = vmatprep.subr.mxu0 0.0
    %429 = vmatpush1.msra.mxu0 0.0
    %430 = vmatprep.subr.mxu0 0.0
    %431 = vmatpush1.msra.mxu0 0.0
    %432 = vmatprep.subr.mxu0 0.0
    %433 = vmatpush1.msra.mxu0 0.0
    %434 = vmatprep.subr.mxu0 0.0
    %435 = vmatpush1.msra.mxu0 0.0
    %436 = vmatprep.subr.mxu0 0.0
    %437 = vmatpush1.msra.mxu0 0.0
    %438 = vmatprep.subr.mxu0 0.0
    %439 = vmatpush1.msra.mxu0 0.0
    %440 = vmatprep.subr.mxu0 0.0
    %441 = vmatpush1.msra.mxu0 0.0
    %442 = vmatprep.subr.mxu0 0.0
    %443 = vmatpush1.msra.mxu0 0.0
    %444 = vmatprep.subr.mxu0 0.0
    %445 = vmatpush1.msra.mxu0 0.0
    %446 = vmatprep.subr.mxu0 0.0
    %447 = vmatpush1.msra.mxu0 0.0
    %448 = vmatprep.subr.mxu0 0.0
    %449 = vmatpush1.msra.mxu0 0.0
    %450 = vmatprep.subr.mxu0 0.0
    %451 = vmatpush1.msra.mxu0 0.0
    %452 = vmatprep.subr.mxu0 0.0
    %453 = vmatpush1.msra.mxu0 0.0
    %454 = vmatprep.subr.mxu0 0.0
    %455 = vmatpush1.msra.mxu0 0.0
    %456 = vmatprep.subr.mxu0 0.0
    %457 = vmatpush1.msra.mxu0 0.0
    %458 = vmatprep.subr.mxu0 0.0
    %459 = vmatpush1.msra.mxu0 0.0
    %460 = vmatprep.subr.mxu0 0.0
    %461 = vmatpush1.msra.mxu0 0.0
    %462 = vmatprep.subr.mxu0 0.0
    %463 = vmatpush1.msra.mxu0 0.0
    %464 = vmatprep.subr.mxu0 0.0
    %465 = vmatpush1.msra.mxu0 0.0
    %466 = vmatprep.subr.mxu0 0.0
    %467 = vmatpush1.msra.mxu0 0.0
    %468 = vmatprep.subr.mxu0 0.0
    %469 = vmatpush1.msra.mxu0 0.0
    %470 = vmatprep.subr.mxu0 0.0
    %471 = vmatpush1.msra.mxu0 0.0
    %472 = vmatprep.subr.mxu0 0.0
    %473 = vmatpush1.msra.mxu0 0.0
    %474 = vmatprep.subr.mxu0 0.0
    %475 = vmatpush1.msra.mxu0 0.0
    %476 = vmatprep.subr.mxu0 0.0
    %477 = vmatpush1.msra.mxu0 0.0
    %478 = vmatprep.mubr.f32.mxu0 0.0
    %479 = vmatmul.mubr.f32.gmra.mrb[0].mxu0 %v409
    %v480 = vpop.f32.mrb[0].mxu0
    %v481 = vadd.f32 0.0, %v480
    %v482 = vpop.f32.mrb[0].mxu0
    %483 = vmatprep.mubr.f32.mxu0 0.0
    %484 = vmatmul.mubr.f32.gmra.mrb[0].mxu0 %v412
    %v485 = vpop.f32.mrb[0].mxu0
    %v486 = vadd.f32 0.0, %v485
    %v487 = vpop.f32.mrb[0].mxu0
    %488 = vdwg.mxu0
    %489 = vrot.lane.b32.xlu0 %v399, 120
    %v490 = vpop.permute.xlu0 %489
    %491 = vrot.lane.b32.xlu0 %v404, 120
    %v492 = vpop.permute.xlu0 %491
    %v493 = vsel %vm118, %v490, 0
    %v495 = vsel %vm118, %v492, 0
    %497 = vmatprep.subr.mxu0 0.0
    %498 = vmatpush1.msra.mxu0 %v407
    %499 = vmatprep.subr.mxu0 0.0
    %500 = vmatpush1.msra.mxu0 0.0
    %501 = vmatprep.subr.mxu0 0.0
    %502 = vmatpush1.msra.mxu0 0.0
    %503 = vmatprep.subr.mxu0 0.0
    %504 = vmatpush1.msra.mxu0 0.0
    %505 = vmatprep.subr.mxu0 0.0
    %506 = vmatpush1.msra.mxu0 0.0
    %507 = vmatprep.subr.mxu0 0.0
    %508 = vmatpush1.msra.mxu0 0.0
    %509 = vmatprep.subr.mxu0 0.0
    %510 = vmatpush1.msra.mxu0 0.0
    %511 = vmatprep.subr.mxu0 0.0
    %512 = vmatpush1.msra.mxu0 0.0
    %513 = vmatprep.subr.mxu0 0.0
    %514 = vmatpush1.msra.mxu0 0.0
    %515 = vmatprep.subr.mxu0 0.0
    %516 = vmatpush1.msra.mxu0 0.0
    %517 = vmatprep.subr.mxu0 0.0
    %518 = vmatpush1.msra.mxu0 0.0
    %519 = vmatprep.subr.mxu0 0.0
    %520 = vmatpush1.msra.mxu0 0.0
    %521 = vmatprep.subr.mxu0 0.0
    %522 = vmatpush1.msra.mxu0 0.0
    %523 = vmatprep.subr.mxu0 0.0
    %524 = vmatpush1.msra.mxu0 0.0
    %525 = vmatprep.subr.mxu0 0.0
    %526 = vmatpush1.msra.mxu0 0.0
    %527 = vmatprep.subr.mxu0 0.0
    %528 = vmatpush1.msra.mxu0 0.0
    %529 = vmatprep.subr.mxu0 0.0
    %530 = vmatpush1.msra.mxu0 0.0
    %531 = vmatprep.subr.mxu0 0.0
    %532 = vmatpush1.msra.mxu0 0.0
    %533 = vmatprep.subr.mxu0 0.0
    %534 = vmatpush1.msra.mxu0 0.0
    %535 = vmatprep.subr.mxu0 0.0
    %536 = vmatpush1.msra.mxu0 0.0
    %537 = vmatprep.subr.mxu0 0.0
    %538 = vmatpush1.msra.mxu0 0.0
    %539 = vmatprep.subr.mxu0 0.0
    %540 = vmatpush1.msra.mxu0 0.0
    %541 = vmatprep.subr.mxu0 0.0
    %542 = vmatpush1.msra.mxu0 0.0
    %543 = vmatprep.subr.mxu0 0.0
    %544 = vmatpush1.msra.mxu0 0.0
    %545 = vmatprep.subr.mxu0 0.0
    %546 = vmatpush1.msra.mxu0 0.0
    %547 = vmatprep.subr.mxu0 0.0
    %548 = vmatpush1.msra.mxu0 0.0
    %549 = vmatprep.subr.mxu0 0.0
    %550 = vmatpush1.msra.mxu0 0.0
    %551 = vmatprep.subr.mxu0 0.0
    %552 = vmatpush1.msra.mxu0 0.0
    %553 = vmatprep.subr.mxu0 0.0
    %554 = vmatpush1.msra.mxu0 0.0
    %555 = vmatprep.subr.mxu0 0.0
    %556 = vmatpush1.msra.mxu0 0.0
    %557 = vmatprep.subr.mxu0 0.0
    %558 = vmatpush1.msra.mxu0 0.0
    %559 = vmatprep.subr.mxu0 0.0
    %560 = vmatpush1.msra.mxu0 0.0
    %561 = vmatprep.mubr.f32.mxu0 0.0
    %562 = vmatmul.mubr.f32.gmra.mrb[0].mxu0 %v493
    %v563 = vpop.f32.mrb[0].mxu0
    %v564 = vadd.f32 0.0, %v563
    %v565 = vpop.f32.mrb[0].mxu0
    %566 = vmatprep.mubr.f32.mxu0 0.0
    %567 = vmatmul.mubr.f32.gmra.mrb[0].mxu0 %v495
    %v568 = vpop.f32.mrb[0].mxu0
    %v569 = vadd.f32 0.0, %v568
    %v570 = vpop.f32.mrb[0].mxu0
    %571 = vdwg.mxu0
    %574 = vrot.lane.b32.xlu0 %v564, 16
    %v575 = vpop.permute.xlu0 %574
    %576 = vrot.lane.b32.xlu0 %v569, 16
    %v577 = vpop.permute.xlu0 %576
    %vm580 = vcmask 130048
    %v581 = vsel %vm580, %v481, %v575
    %v582 = vsel %vm580, %v486, %v577
    %v583 = vld [vmem:[#allocation11] sm:$0x1]
    %v585 = vlaneseq
    %v586 = vshrl.u32 %v585, 7
    %v587 = vsub.s32 0, %v586
    %v588 = vrot.slane %v583, %v587
    %v590 = vadd.f32 %v581, %v588
    %v591 = vadd.f32 %v582, %v588
    %vm592 = vcmask 261120
    %593 = vst.msk [vmem:[#allocation13] sm:$0xff] %vm592, %v590
    %594 = vst.msk [vmem:[#allocation13 + $0x8] sm:$0xff] %vm592, %v591
    // Predicated region
    $region50: #{node_shuffle.1} parent=1 // pred_check
      _
    $region51: #{node_shuffle.1} parent=1 // pred_check_branch
      %596 = sbr.rel (0) target = $region53
    $region52: #{node_shuffle.1} parent=1 // pred_region
      %s598 = ssub.s32 256, 256
      %599 = vsyncadd [#allocation4], %s598
      %s600 = sshll.u32 [#allocation13], 4
      %s601 = int_to_ptr.vmem [resolvable:$true] %s600
      %606 = dma.vmem_to_hbm [thread:$0]  %s601, 256, %s6, [#allocation4], 128, 128, 8
    $region53: #{node_shuffle.1} parent=1 // pred_fallthru
      _
    // Predicated region
    $region54: #{node_shuffle.1} parent=1 // pred_check
      _
    $region55: #{node_shuffle.1} parent=1 // pred_check_branch
      %608 = sbr.rel (0) target = $region57
    $region56: #{node_shuffle.1} parent=1 // pred_region
      %609 = dma.done [#allocation4], 256
    $region57: #{node_shuffle.1} parent=1 // pred_fallthru
      _
    %610 = vsyncpa [#allocation3], 1
    %611 = vsyncpa [#allocation6], 1
    %612 = vsyncpa [#allocation9], 1
    %613 = vsyncpa [#allocation12], 1
    %614 = vsyncpa [#allocation4], 1

</llo_original>
